<compile_context>
chip_gen: v7x
topology: tpu7x:2x2x1
jax: 0.10.0
libtpu: 0.0.40
codegen_flags: <defaults>
</compile_context>

<pallas_src>
import functools

import jax
import jax.numpy as jnp
from jax.experimental import pallas as pl
from jax.experimental.pallas import tpu as pltpu

EPS = 1e-5
_MAX_TILE_ROWS = 1024
_MIN_FOLD_EMB = 8  # bound the static per-segment unroll to k <= 16


# --------------------------------------------------------------------------- #
# Hardware queries (trace-time; safe fallbacks if unavailable).
# --------------------------------------------------------------------------- #
def _tpu_info():
    try:
        return pltpu.get_tpu_info()
    except Exception:
        return None


def _num_tensorcores():
    info = _tpu_info()
    if info is not None:
        for name in ("num_cores", "core_count", "tensorcore_count", "num_tensorcores"):
            n = getattr(info, name, None)
            try:
                n = int(n)
            except (TypeError, ValueError):
                continue
            if n > 0:
                return n
    return 2  # conservative: v7x has 2 TCs; 1 extra grid step is ~free on v5e/v6e


def _vmem_budget_and_limit():
    cap = 64 * 1024 * 1024  # conservative default = v7x physical VMEM per TC
    info = _tpu_info()
    if info is not None:
        c = getattr(info, "vmem_capacity_bytes", None)
        try:
            c = int(c)
        except (TypeError, ValueError):
            c = None
        if c and c > 0:
            cap = c
    # Leave headroom for compiler-internal scratch: ~65% of physical as the
    # scoped limit (v7x ~41 MiB, v5e/v6e ~83 MiB), 85% of that as the pipeline
    # working-set budget used for tile sizing.
    limit = min(int(cap * 0.65), 96 * 1024 * 1024)
    budget = int(limit * 0.85)
    return budget, limit


def _sublane_multiple(dtype):
    """Packed sublane count per vreg for the dtype (row-tile alignment)."""
    itemsize = jnp.dtype(dtype).itemsize
    return {4: 8, 2: 16, 1: 32}.get(itemsize, 8)


def _pick_tile_rows(rows, emb, dtype, vmem_budget):
    """Largest dtype-aligned row tile fitting the VMEM budget, split across TCs."""
    itemsize = jnp.dtype(dtype).itemsize
    sub = _sublane_multiple(dtype)
    if rows < sub:
        return int(rows)  # single partial block; block rows == full array extent
    # Per-row VMEM: in + out double-buffered (4 * itemsize) + f32 copy of x and
    # ~2 f32 temporaries (12 B/elem).  Honest for bf16/int8 inputs too.
    per_row_bytes = emb * (4 * itemsize + 12)
    t = vmem_budget // max(per_row_bytes, 1)
    t = min(t, _MAX_TILE_ROWS)
    t = max(sub, (t // sub) * sub)
    # Give each TensorCore at least one shard of the parallel grid axis
    # (round UP so we don't create a tiny trailing step).
    n_cores = _num_tensorcores()
    if n_cores > 1 and rows >= n_cores * sub:
        per_core = -(-rows // n_cores)
        per_core = -(-per_core // sub) * sub
        t = min(t, per_core)
    # Never exceed the row count (keep sublane alignment; partial block is OK).
    if t > rows:
        t = max(sub, (rows // sub) * sub)
    return int(t)


# --------------------------------------------------------------------------- #
# Kernels
# --------------------------------------------------------------------------- #
def layernorm_kernel(x_ref, scale_ref, shift_ref, o_ref):
    """Standard path: one row per tile-row, normalize over the lane axis."""
    x = x_ref[...].astype(jnp.float32)                       # (tile_rows, emb)
    mean = jnp.mean(x, axis=-1, keepdims=True)
    xc = x - mean
    var = jnp.mean(xc * xc, axis=-1, keepdims=True)          # two-pass (stable)
    inv_std = jax.lax.rsqrt(var + EPS)
    scale = scale_ref[...].astype(jnp.float32)                # (1, emb)
    shift = shift_ref[...].astype(jnp.float32)                # (1, emb)
    o_ref[...] = (xc * inv_std * scale + shift).astype(o_ref.dtype)


def layernorm_folded_kernel(x_ref, scale_ref, shift_ref, o_ref, *, emb, k):
    """Lane-folded path: k original rows packed into the 128-lane axis.

    x_ref is (tile_rows, k*emb); segment s (lanes [s*emb, (s+1)*emb)) is an
    independent original row.  Segmented mean/var, then one dense store.
    """
    x = x_ref[...].astype(jnp.float32)                        # (T, k*emb)
    scale = scale_ref[...].astype(jnp.float32)                # (1, k*emb) (tiled)
    shift = shift_ref[...].astype(jnp.float32)
    parts = []
    for s in range(k):                                        # k is static, <= 16
        lo = s * emb
        xs = x[:, lo:lo + emb]
        mean = jnp.mean(xs, axis=-1, keepdims=True)
        xc = xs - mean
        var = jnp.mean(xc * xc, axis=-1, keepdims=True)
        inv_std = jax.lax.rsqrt(var + EPS)
        parts.append(xc * inv_std * scale[:, lo:lo + emb] + shift[:, lo:lo + emb])
    o_ref[...] = jnp.concatenate(parts, axis=-1).astype(o_ref.dtype)  # dense vst


# --------------------------------------------------------------------------- #
# Wrapper
# --------------------------------------------------------------------------- #
def layernorm(x, scale, shift, *, tile_rows=None):
    """x: (rows, emb); scale/shift: (emb,). Returns (rows, emb)."""
    rows, emb = x.shape
    budget, limit = _vmem_budget_and_limit()

    # Small-emb lane fold (free row-major reinterpretation, no HBM copy).
    k = 1
    if emb < 128 and emb >= _MIN_FOLD_EMB and 128 % emb == 0:
        kk = 128 // emb
        if rows % kk == 0:
            k = kk

    if k > 1:
        x_work = x.reshape(rows // k, k * emb)
        scale2d = jnp.tile(scale.reshape(1, emb), (1, k))
        shift2d = jnp.tile(shift.reshape(1, emb), (1, k))
        kernel = functools.partial(layernorm_folded_kernel, emb=emb, k=k)
    else:
        x_work = x
        scale2d = scale.reshape(1, emb)
        shift2d = shift.reshape(1, emb)
        kernel = layernorm_kernel

    w_rows, w_emb = x_work.shape
    if tile_rows is None:
        t = _pick_tile_rows(w_rows, w_emb, x.dtype, budget)
    else:
        sub = _sublane_multiple(x.dtype)
        t = max(1, min(int(tile_rows), w_rows))
        if t >= sub:
            t = (t // sub) * sub

    grid = (pl.cdiv(w_rows, t),)

    itemsize = jnp.dtype(x.dtype).itemsize
    p_itemsize = jnp.dtype(scale.dtype).itemsize
    cost = pl.CostEstimate(
        flops=10 * rows * emb,
        transcendentals=rows,
        bytes_accessed=2 * rows * emb * itemsize + 2 * emb * p_itemsize,
    )

    out = pl.pallas_call(
        kernel,
        out_shape=jax.ShapeDtypeStruct((w_rows, w_emb), x.dtype),
        grid_spec=pltpu.PrefetchScalarGridSpec(
            num_scalar_prefetch=0,
            grid=grid,
            in_specs=[
                pl.BlockSpec((t, w_emb), lambda i: (i, 0)),
                pl.BlockSpec((1, w_emb), lambda i: (0, 0)),  # resident: constant index
                pl.BlockSpec((1, w_emb), lambda i: (0, 0)),
            ],
            out_specs=pl.BlockSpec((t, w_emb), lambda i: (i, 0)),
        ),
        compiler_params=pltpu.CompilerParams(
            dimension_semantics=("parallel",),
            vmem_limit_bytes=limit,
        ),
        cost_estimate=cost,
    )(x_work, scale2d, shift2d)

    if k > 1:
        out = out.reshape(rows, emb)
    return out


def layernorm_nd(x, scale, shift):
    """Apply LayerNorm over the last axis of an arbitrary-rank input."""
    orig_shape = x.shape
    emb = orig_shape[-1]
    out = layernorm(x.reshape(-1, emb), scale, shift)
    return out.reshape(orig_shape)


def layernorm_ref(x, scale, shift):
    mean = jnp.mean(x, axis=-1, keepdims=True)
    var = jnp.mean((x - mean) ** 2, axis=-1, keepdims=True)
    return scale * (x - mean) / jnp.sqrt(var + EPS) + shift


if __name__ == "__main__":
    key = jax.random.PRNGKey(0)
    batch, seq, emb = 2, 8, 32

    x = jax.random.normal(key, (batch, seq, emb), dtype=jnp.float32)
    # nn.Parameter(torch.ones(emb)) / nn.Parameter(torch.zeros(emb))
    scale = jnp.ones((emb,), dtype=jnp.float32)
    shift = jnp.zeros((emb,), dtype=jnp.float32)

    # Lane-folded path (emb=32 -> k=4, rows=16 divisible by 4).
    out = jax.block_until_ready(layernorm_nd(x, scale, shift))
    ref = layernorm_ref(x, scale, shift)
    assert out.shape == x.shape
    assert jnp.allclose(out, ref, atol=1e-5, rtol=1e-4), "mismatch vs reference"

    # Ragged rows (rows=15 not divisible by k) -> non-folded path, partial blocks.
    x_ragged = jax.random.normal(jax.random.PRNGKey(1), (3, 5, emb), dtype=jnp.float32)
    out_r = jax.block_until_ready(layernorm_nd(x_ragged, scale, shift))
    ref_r = layernorm_ref(x_ragged, scale, shift)
    assert out_r.shape == x_ragged.shape
    assert jnp.allclose(out_r, ref_r, atol=1e-5, rtol=1e-4), "ragged mismatch"

    # Lane-aligned standard path (emb=128), partial last row block (24 rows, 16-row tiles).
    emb2 = 128
    x_wide = jax.random.normal(jax.random.PRNGKey(2), (2, 12, emb2), dtype=jnp.float32)
    scale2 = jnp.ones((emb2,), dtype=jnp.float32)
    shift2 = jnp.zeros((emb2,), dtype=jnp.float32)
    out_w = jax.block_until_ready(layernorm_nd(x_wide, scale2, shift2))
    ref_w = layernorm_ref(x_wide, scale2, shift2)
    assert out_w.shape == x_wide.shape
    assert jnp.allclose(out_w, ref_w, atol=1e-5, rtol=1e-4), "wide mismatch"

    print("KERNEL_OK")
</pallas_src>

<mosaic_0001>
module attributes {stable_mosaic.version = 11 : i64} {
  func.func @layernorm_folded_kernel(%arg0: i32, %arg1: memref<4x128xf32, #tpu.memory_space<vmem>>, %arg2: memref<1x128xf32, #tpu.memory_space<vmem>>, %arg3: memref<1x128xf32, #tpu.memory_space<vmem>>, %arg4: memref<4x128xf32, #tpu.memory_space<vmem>>) attributes {dimension_semantics = [#tpu.dimension_semantics<parallel>], iteration_bounds = array<i64: 1>, scalar_prefetch = 0 : i64, scratch_operands = 0 : i64, tpu.core_type = #tpu.core_type<tc>, window_params = [{transform_indices = @transform_0, window_bounds = array<i64: 4, 128>}, {pipeline_mode = #tpu.pipeline_mode<synchronous>, transform_indices = @transform_1, window_bounds = array<i64: 1, 128>}, {pipeline_mode = #tpu.pipeline_mode<synchronous>, transform_indices = @transform_2, window_bounds = array<i64: 1, 128>}, {transform_indices = @transform_3, window_bounds = array<i64: 4, 128>}]} {
    %c0 = arith.constant 0 : index
    %c0_0 = arith.constant 0 : index
    %0 = vector.load %arg1[%c0, %c0_0] : memref<4x128xf32, #tpu.memory_space<vmem>>, vector<4x128xf32>
    %c0_1 = arith.constant 0 : index
    %c0_2 = arith.constant 0 : index
    %1 = vector.load %arg2[%c0_1, %c0_2] : memref<1x128xf32, #tpu.memory_space<vmem>>, vector<1x128xf32>
    %c0_3 = arith.constant 0 : index
    %c0_4 = arith.constant 0 : index
    %2 = vector.load %arg3[%c0_3, %c0_4] : memref<1x128xf32, #tpu.memory_space<vmem>>, vector<1x128xf32>
    %3 = vector.extract_strided_slice %0 {offsets = [0, 0], sizes = [4, 32], strides = [1, 1]} : vector<4x128xf32> to vector<4x32xf32>
    %cst = arith.constant dense<0.000000e+00> : vector<4xf32>
    %4 = vector.multi_reduction <add>, %3, %cst [1] : vector<4x32xf32> to vector<4xf32>
    %5 = vector.shape_cast %4 : vector<4xf32> to vector<4x1xf32>
    %cst_5 = arith.constant 3.200000e+01 : f32
    %6 = vector.broadcast %cst_5 : f32 to vector<4x1xf32>
    %7 = arith.divf %5, %6 : vector<4x1xf32>
    %8 = vector.broadcast %7 : vector<4x1xf32> to vector<4x32xf32>
    %9 = arith.subf %3, %8 : vector<4x32xf32>
    %10 = arith.mulf %9, %9 : vector<4x32xf32>
    %cst_6 = arith.constant dense<0.000000e+00> : vector<4xf32>
    %11 = vector.multi_reduction <add>, %10, %cst_6 [1] : vector<4x32xf32> to vector<4xf32>
    %12 = vector.shape_cast %11 : vector<4xf32> to vector<4x1xf32>
    %cst_7 = arith.constant 3.200000e+01 : f32
    %13 = vector.broadcast %cst_7 : f32 to vector<4x1xf32>
    %14 = arith.divf %12, %13 : vector<4x1xf32>
    %cst_8 = arith.constant 9.99999974E-6 : f32
    %15 = vector.broadcast %cst_8 : f32 to vector<4x1xf32>
    %16 = arith.addf %14, %15 : vector<4x1xf32>
    %17 = math.rsqrt %16 : vector<4x1xf32>
    %18 = vector.broadcast %17 : vector<4x1xf32> to vector<4x32xf32>
    %19 = arith.mulf %9, %18 : vector<4x32xf32>
    %20 = vector.extract_strided_slice %1 {offsets = [0, 0], sizes = [1, 32], strides = [1, 1]} : vector<1x128xf32> to vector<1x32xf32>
    %21 = vector.broadcast %20 : vector<1x32xf32> to vector<4x32xf32>
    %22 = arith.mulf %19, %21 : vector<4x32xf32>
    %23 = vector.extract_strided_slice %2 {offsets = [0, 0], sizes = [1, 32], strides = [1, 1]} : vector<1x128xf32> to vector<1x32xf32>
    %24 = vector.broadcast %23 : vector<1x32xf32> to vector<4x32xf32>
    %25 = arith.addf %22, %24 : vector<4x32xf32>
    %26 = vector.extract_strided_slice %0 {offsets = [0, 32], sizes = [4, 32], strides = [1, 1]} : vector<4x128xf32> to vector<4x32xf32>
    %cst_9 = arith.constant dense<0.000000e+00> : vector<4xf32>
    %27 = vector.multi_reduction <add>, %26, %cst_9 [1] : vector<4x32xf32> to vector<4xf32>
    %28 = vector.shape_cast %27 : vector<4xf32> to vector<4x1xf32>
    %cst_10 = arith.constant 3.200000e+01 : f32
    %29 = vector.broadcast %cst_10 : f32 to vector<4x1xf32>
    %30 = arith.divf %28, %29 : vector<4x1xf32>
    %31 = vector.broadcast %30 : vector<4x1xf32> to vector<4x32xf32>
    %32 = arith.subf %26, %31 : vector<4x32xf32>
    %33 = arith.mulf %32, %32 : vector<4x32xf32>
    %cst_11 = arith.constant dense<0.000000e+00> : vector<4xf32>
    %34 = vector.multi_reduction <add>, %33, %cst_11 [1] : vector<4x32xf32> to vector<4xf32>
    %35 = vector.shape_cast %34 : vector<4xf32> to vector<4x1xf32>
    %cst_12 = arith.constant 3.200000e+01 : f32
    %36 = vector.broadcast %cst_12 : f32 to vector<4x1xf32>
    %37 = arith.divf %35, %36 : vector<4x1xf32>
    %cst_13 = arith.constant 9.99999974E-6 : f32
    %38 = vector.broadcast %cst_13 : f32 to vector<4x1xf32>
    %39 = arith.addf %37, %38 : vector<4x1xf32>
    %40 = math.rsqrt %39 : vector<4x1xf32>
    %41 = vector.broadcast %40 : vector<4x1xf32> to vector<4x32xf32>
    %42 = arith.mulf %32, %41 : vector<4x32xf32>
    %43 = vector.extract_strided_slice %1 {offsets = [0, 32], sizes = [1, 32], strides = [1, 1]} : vector<1x128xf32> to vector<1x32xf32>
    %44 = vector.broadcast %43 : vector<1x32xf32> to vector<4x32xf32>
    %45 = arith.mulf %42, %44 : vector<4x32xf32>
    %46 = vector.extract_strided_slice %2 {offsets = [0, 32], sizes = [1, 32], strides = [1, 1]} : vector<1x128xf32> to vector<1x32xf32>
    %47 = vector.broadcast %46 : vector<1x32xf32> to vector<4x32xf32>
    %48 = arith.addf %45, %47 : vector<4x32xf32>
    %49 = vector.extract_strided_slice %0 {offsets = [0, 64], sizes = [4, 32], strides = [1, 1]} : vector<4x128xf32> to vector<4x32xf32>
    %cst_14 = arith.constant dense<0.000000e+00> : vector<4xf32>
    %50 = vector.multi_reduction <add>, %49, %cst_14 [1] : vector<4x32xf32> to vector<4xf32>
    %51 = vector.shape_cast %50 : vector<4xf32> to vector<4x1xf32>
    %cst_15 = arith.constant 3.200000e+01 : f32
    %52 = vector.broadcast %cst_15 : f32 to vector<4x1xf32>
    %53 = arith.divf %51, %52 : vector<4x1xf32>
    %54 = vector.broadcast %53 : vector<4x1xf32> to vector<4x32xf32>
    %55 = arith.subf %49, %54 : vector<4x32xf32>
    %56 = arith.mulf %55, %55 : vector<4x32xf32>
    %cst_16 = arith.constant dense<0.000000e+00> : vector<4xf32>
    %57 = vector.multi_reduction <add>, %56, %cst_16 [1] : vector<4x32xf32> to vector<4xf32>
    %58 = vector.shape_cast %57 : vector<4xf32> to vector<4x1xf32>
    %cst_17 = arith.constant 3.200000e+01 : f32
    %59 = vector.broadcast %cst_17 : f32 to vector<4x1xf32>
    %60 = arith.divf %58, %59 : vector<4x1xf32>
    %cst_18 = arith.constant 9.99999974E-6 : f32
    %61 = vector.broadcast %cst_18 : f32 to vector<4x1xf32>
    %62 = arith.addf %60, %61 : vector<4x1xf32>
    %63 = math.rsqrt %62 : vector<4x1xf32>
    %64 = vector.broadcast %63 : vector<4x1xf32> to vector<4x32xf32>
    %65 = arith.mulf %55, %64 : vector<4x32xf32>
    %66 = vector.extract_strided_slice %1 {offsets = [0, 64], sizes = [1, 32], strides = [1, 1]} : vector<1x128xf32> to vector<1x32xf32>
    %67 = vector.broadcast %66 : vector<1x32xf32> to vector<4x32xf32>
    %68 = arith.mulf %65, %67 : vector<4x32xf32>
    %69 = vector.extract_strided_slice %2 {offsets = [0, 64], sizes = [1, 32], strides = [1, 1]} : vector<1x128xf32> to vector<1x32xf32>
    %70 = vector.broadcast %69 : vector<1x32xf32> to vector<4x32xf32>
    %71 = arith.addf %68, %70 : vector<4x32xf32>
    %72 = vector.extract_strided_slice %0 {offsets = [0, 96], sizes = [4, 32], strides = [1, 1]} : vector<4x128xf32> to vector<4x32xf32>
    %cst_19 = arith.constant dense<0.000000e+00> : vector<4xf32>
    %73 = vector.multi_reduction <add>, %72, %cst_19 [1] : vector<4x32xf32> to vector<4xf32>
    %74 = vector.shape_cast %73 : vector<4xf32> to vector<4x1xf32>
    %cst_20 = arith.constant 3.200000e+01 : f32
    %75 = vector.broadcast %cst_20 : f32 to vector<4x1xf32>
    %76 = arith.divf %74, %75 : vector<4x1xf32>
    %77 = vector.broadcast %76 : vector<4x1xf32> to vector<4x32xf32>
    %78 = arith.subf %72, %77 : vector<4x32xf32>
    %79 = arith.mulf %78, %78 : vector<4x32xf32>
    %cst_21 = arith.constant dense<0.000000e+00> : vector<4xf32>
    %80 = vector.multi_reduction <add>, %79, %cst_21 [1] : vector<4x32xf32> to vector<4xf32>
    %81 = vector.shape_cast %80 : vector<4xf32> to vector<4x1xf32>
    %cst_22 = arith.constant 3.200000e+01 : f32
    %82 = vector.broadcast %cst_22 : f32 to vector<4x1xf32>
    %83 = arith.divf %81, %82 : vector<4x1xf32>
    %cst_23 = arith.constant 9.99999974E-6 : f32
    %84 = vector.broadcast %cst_23 : f32 to vector<4x1xf32>
    %85 = arith.addf %83, %84 : vector<4x1xf32>
    %86 = math.rsqrt %85 : vector<4x1xf32>
    %87 = vector.broadcast %86 : vector<4x1xf32> to vector<4x32xf32>
    %88 = arith.mulf %78, %87 : vector<4x32xf32>
    %89 = vector.extract_strided_slice %1 {offsets = [0, 96], sizes = [1, 32], strides = [1, 1]} : vector<1x128xf32> to vector<1x32xf32>
    %90 = vector.broadcast %89 : vector<1x32xf32> to vector<4x32xf32>
    %91 = arith.mulf %88, %90 : vector<4x32xf32>
    %92 = vector.extract_strided_slice %2 {offsets = [0, 96], sizes = [1, 32], strides = [1, 1]} : vector<1x128xf32> to vector<1x32xf32>
    %93 = vector.broadcast %92 : vector<1x32xf32> to vector<4x32xf32>
    %94 = arith.addf %91, %93 : vector<4x32xf32>
    %95 = tpu.concatenate %25, %48, %71, %94 in 1 : vector<4x32xf32>, vector<4x32xf32>, vector<4x32xf32>, vector<4x32xf32> -> vector<4x128xf32>
    %c0_24 = arith.constant 0 : index
    %c0_25 = arith.constant 0 : index
    %96 = vector.load %arg4[%c0_24, %c0_25] : memref<4x128xf32, #tpu.memory_space<vmem>>, vector<4x128xf32>
    tpu.vector_store %arg4[%c0_24, %c0_25], %95 {strides = array<i32>} : memref<4x128xf32, #tpu.memory_space<vmem>>, vector<4x128xf32>,
    return
  }
  func.func @transform_0(%arg0: i32) -> (i32, i32) {
    %c0_i32 = arith.constant 0 : i32
    %c0_i32_0 = arith.constant 0 : i32
    return %arg0, %c0_i32 : i32, i32
  }
  func.func @transform_1(%arg0: i32) -> (i32, i32) {
    %c0_i32 = arith.constant 0 : i32
    %c0_i32_0 = arith.constant 0 : i32
    %c0_i32_1 = arith.constant 0 : i32
    return %c0_i32, %c0_i32_0 : i32, i32
  }
  func.func @transform_2(%arg0: i32) -> (i32, i32) {
    %c0_i32 = arith.constant 0 : i32
    %c0_i32_0 = arith.constant 0 : i32
    %c0_i32_1 = arith.constant 0 : i32
    return %c0_i32, %c0_i32_0 : i32, i32
  }
  func.func @transform_3(%arg0: i32) -> (i32, i32) {
    %c0_i32 = arith.constant 0 : i32
    %c0_i32_0 = arith.constant 0 : i32
    return %arg0, %c0_i32 : i32, i32
  }
}

</mosaic_0001>

<llo_original>
// kernel: tpu_custom_call.1
$region0: #{tpu_custom_call.1}
  #allocation0 [shape = 'u32[]', space=smem, size = 0x4, offset = 0x4, fixed_abs, tag = 'smem constant byte address 0x4 - core index']
  #allocation1 [shape = 'u32[144,128]{1,0:T(1,128)}', space=vmem, size = 0x12000, scoped, tag = 'internal scratch']
  %s0 = inlined_call_operand.hbm [shape: f32[4,128], index: 0, kind: input, shape index: {}]
  %s1 = inlined_call_operand.vmem [shape: f32[1,128], index: 1, kind: input, shape index: {}]
  %s2 = inlined_call_operand.vmem [shape: f32[1,128], index: 2, kind: input, shape index: {}]
  %s3 = inlined_call_operand.hbm [shape: f32[4,128], index: 3, kind: output, shape index: {}]
  %s4 = sld [smem:[#allocation0]]
  $region26: #{tpu_custom_call.1} parent=0
    _
  %s6 = ssub.s32 1, %s4
  %s7 = scalar_select 0, %s6, %s4
  $region1: #{tpu_custom_call.1} parent=0
    #allocation2 [shape = 'u8[2048]{0}', space=vmem, size = 0x800, scoped, tag = 'input window, operand 0, single buffered']
    #allocation3 [shape = 's32[1]{0}', space=sflag, size = 0x4, scoped, tag = 'scoped memory for tpu_custom_call.1']
    #allocation4 [shape = 's32[1]{0}', space=sflag, size = 0x4, scoped, tag = 'scoped memory for tpu_custom_call.1']
    #allocation5 [shape = 'u8[2048]{0}', space=vmem, size = 0x800, scoped, tag = 'output window, operand 0, single buffered']
    %8 = vsyncpa [#allocation3], 0
    %9 = vsyncpa [#allocation4], 0
    // Predicated region
    $region2: #{tpu_custom_call.1} parent=1 // pred_check
      _
    $region3: #{tpu_custom_call.1} parent=1 // pred_check_branch
      %11 = sbr.rel (0) target = $region5
    $region4: #{tpu_custom_call.1} parent=1 // pred_region
      %s13 = ssub.s32 64, 64
      %14 = vsyncadd [#allocation3], %s13
      %s16 = sshll.u32 [#allocation2], 4
      %s17 = int_to_ptr.vmem [resolvable:$true] %s16
      %19 = dma.hbm_to_vmem [thread:$0]  %s0, 64, %s17, [#allocation3]
    $region5: #{tpu_custom_call.1} parent=1 // pred_fallthru
      _
    // Predicated region
    $region6: #{tpu_custom_call.1} parent=1 // pred_check
      _
    $region7: #{tpu_custom_call.1} parent=1 // pred_check_branch
      %21 = sbr.rel (0) target = $region9
    $region8: #{tpu_custom_call.1} parent=1 // pred_region
      _
    $region9: #{tpu_custom_call.1} parent=1 // pred_fallthru
      _
    // Predicated region
    $region10: #{tpu_custom_call.1} parent=1 // pred_check
      _
    $region11: #{tpu_custom_call.1} parent=1 // pred_check_branch
      %23 = sbr.rel (0) target = $region13
    $region12: #{tpu_custom_call.1} parent=1 // pred_region
      _
    $region13: #{tpu_custom_call.1} parent=1 // pred_fallthru
      _
    // Predicated region
    $region14: #{tpu_custom_call.1} parent=1 // pred_check
      _
    $region15: #{tpu_custom_call.1} parent=1 // pred_check_branch
      %25 = sbr.rel (0) target = $region17
    $region16: #{tpu_custom_call.1} parent=1 // pred_region
      %26 = dma.done [#allocation3], 64
    $region17: #{tpu_custom_call.1} parent=1 // pred_fallthru
      _
    %v27 = vld [vmem:[#allocation2] sm:$0xf]
    %v28 = vld [vmem:[%s1] sm:$0x1]
    %v29 = vld [vmem:[%s2] sm:$0x1]
    %vm30 = vcmask 257024
    %v31 = vsel %vm30, %v27, 0.0
    %32 = vadd.xlane.f32.xlu0 %v31
    %v33 = vpop.xlane.xlu0 %32
    %v34 = vrcp.pop 32.0
    %v35 = vmul.f32 %v33, %v34
    %v36 = vsub.f32 %v27, %v35
    %v37 = vmul.f32 %v36, %v36
    %v38 = vsel %vm30, %v37, 0.0
    %39 = vadd.xlane.f32.xlu0 %v38
    %v40 = vpop.xlane.xlu0 %39
    %v41 = vmul.f32 %v40, %v34
    %v42 = vadd.f32 %v41, 1e-05
    %v43 = vrsqrt.pop %v42
    %v44 = vmul.f32 %v36, %v43
    %v46 = vlaneseq
    %v47 = vshrl.u32 %v46, 7
    %v48 = vsub.s32 0, %v47
    %v49 = vrot.slane %v28, %v48
    %v51 = vmul.f32 %v44, %v49
    %v53 = vlaneseq
    %v54 = vshrl.u32 %v53, 7
    %v55 = vsub.s32 0, %v54
    %v56 = vrot.slane %v29, %v55
    %v58 = vadd.f32 %v51, %v56
    %60 = vrot.lane.b32.xlu0 %v27, 96
    %v61 = vpop.permute.xlu0 %60
    %v63 = vsel %vm30, %v61, 0.0
    %64 = vadd.xlane.f32.xlu0 %v63
    %v65 = vpop.xlane.xlu0 %64
    %v66 = vmul.f32 %v65, %v34
    %v67 = vsub.f32 %v27, %v66
    %v68 = vmul.f32 %v67, %v67
    %70 = vrot.lane.b32.xlu0 %v68, 96
    %v71 = vpop.permute.xlu0 %70
    %v73 = vsel %vm30, %v71, 0.0
    %74 = vadd.xlane.f32.xlu0 %v73
    %v75 = vpop.xlane.xlu0 %74
    %v76 = vmul.f32 %v75, %v34
    %v77 = vadd.f32 %v76, 1e-05
    %v78 = vrsqrt.pop %v77
    %v79 = vmul.f32 %v67, %v78
    %v80 = vmul.f32 %v79, %v49
    %v81 = vadd.f32 %v80, %v56
    %82 = vrot.lane.b32.xlu0 %v27, 64
    %v83 = vpop.permute.xlu0 %82
    %v85 = vsel %vm30, %v83, 0.0
    %86 = vadd.xlane.f32.xlu0 %v85
    %v87 = vpop.xlane.xlu0 %86
    %v88 = vmul.f32 %v87, %v34
    %v89 = vsub.f32 %v27, %v88
    %v90 = vmul.f32 %v89, %v89
    %92 = vrot.lane.b32.xlu0 %v90, 64
    %v93 = vpop.permute.xlu0 %92
    %v95 = vsel %vm30, %v93, 0.0
    %96 = vadd.xlane.f32.xlu0 %v95
    %v97 = vpop.xlane.xlu0 %96
    %v98 = vmul.f32 %v97, %v34
    %v99 = vadd.f32 %v98, 1e-05
    %v100 = vrsqrt.pop %v99
    %v101 = vmul.f32 %v89, %v100
    %v102 = vmul.f32 %v101, %v49
    %v103 = vadd.f32 %v102, %v56
    %104 = vrot.lane.b32.xlu0 %v27, 32
    %v105 = vpop.permute.xlu0 %104
    %v107 = vsel %vm30, %v105, 0.0
    %108 = vadd.xlane.f32.xlu0 %v107
    %v109 = vpop.xlane.xlu0 %108
    %v110 = vmul.f32 %v109, %v34
    %v111 = vsub.f32 %v27, %v110
    %v112 = vmul.f32 %v111, %v111
    %114 = vrot.lane.b32.xlu0 %v112, 32
    %v115 = vpop.permute.xlu0 %114
    %v117 = vsel %vm30, %v115, 0.0
    %118 = vadd.xlane.f32.xlu0 %v117
    %v119 = vpop.xlane.xlu0 %118
    %v120 = vmul.f32 %v119, %v34
    %v121 = vadd.f32 %v120, 1e-05
    %v122 = vrsqrt.pop %v121
    %v123 = vmul.f32 %v111, %v122
    %v124 = vmul.f32 %v123, %v49
    %v125 = vadd.f32 %v124, %v56
    %vm126 = vcmask 261120
    %v127 = vsel %vm126, %v58, %v81
    %vm128 = vcmask 523264
    %v129 = vsel %vm128, %v127, %v103
    %vm130 = vcmask 785408
    %v131 = vsel %vm130, %v129, %v125
    %132 = vst [vmem:[#allocation5] sm:$0xf] %v131
    // Predicated region
    $region18: #{tpu_custom_call.1} parent=1 // pred_check
      _
    $region19: #{tpu_custom_call.1} parent=1 // pred_check_branch
      %134 = sbr.rel (0) target = $region21
    $region20: #{tpu_custom_call.1} parent=1 // pred_region
      %s136 = ssub.s32 64, 64
      %137 = vsyncadd [#allocation4], %s136
      %s139 = sshll.u32 [#allocation5], 4
      %s140 = int_to_ptr.vmem [resolvable:$true] %s139
      %142 = dma.vmem_to_hbm [thread:$0]  %s140, 64, %s3, [#allocation4]
    $region21: #{tpu_custom_call.1} parent=1 // pred_fallthru
      _
    // Predicated region
    $region22: #{tpu_custom_call.1} parent=1 // pred_check
      _
    $region23: #{tpu_custom_call.1} parent=1 // pred_check_branch
      %144 = sbr.rel (0) target = $region25
    $region24: #{tpu_custom_call.1} parent=1 // pred_region
      %145 = dma.done [#allocation4], 64
    $region25: #{tpu_custom_call.1} parent=1 // pred_fallthru
      _
    %146 = vsyncpa [#allocation3], 1
    %147 = vsyncpa [#allocation4], 1

</llo_original>
